<compile_context>
chip_gen: v6e
topology: v6e:2x2x1
jax: 0.10.0
libtpu: 0.0.40
codegen_flags: <defaults>
</compile_context>

<pallas_src>
import functools

import jax
import jax.numpy as jnp
from jax import lax
from jax.experimental import pallas as pl
from jax.experimental.pallas import tpu as pltpu

LANES = 128
ACC_ROWS = 32    # resident accumulator sublanes (ILP for partial sums)
ROW_ALIGN = 32   # block-row granularity: >= min sublane tile for f32/bf16/int8


def _masked_mse_kernel(x_ref, t_ref, m_ref, acc_ref, *,
                       tile_rows, blocks_per_core, fast_blocks,
                       mask_possible, full_rows, lane_rem):
    i = pl.program_id(1)

    @pl.when(i == 0)
    def _():
        acc_ref[...] = jnp.zeros_like(acc_ref)

    # Stream at native dtype from HBM; upcast in VMEM (bf16 inputs / int8 or
    # bool mask are supported and cut HBM traffic -- no kernel change needed).
    x = x_ref[...].astype(jnp.float32)
    t = t_ref[...].astype(jnp.float32)
    w = 1.0 - m_ref[...].astype(jnp.float32)
    d = x - t
    contrib = d * d * w

    def accumulate(v):
        # Sublane-tiled partial sums into the resident (32,128) accumulator:
        # pure VPU adds, no cross-lane XLU work.
        main = (tile_rows // ACC_ROWS) * ACC_ROWS
        if main:
            acc_ref[...] += jnp.sum(
                v[:main].reshape(main // ACC_ROWS, ACC_ROWS, LANES), axis=0)
        rem = tile_rows - main
        if rem:
            acc_ref[0:rem, :] += v[main:]

    if not mask_possible:
        # Exact tiling: no block ever needs masking.
        accumulate(contrib)
        return

    b = pl.program_id(0) * blocks_per_core + i  # logical block index

    def masked():
        # Only the tail / duplicated-clamped blocks pay for this.
        row = lax.broadcasted_iota(jnp.int32, (tile_rows, LANES), 0)
        grow = b * tile_rows + row               # global row index
        if lane_rem == 0:
            valid = grow < full_rows
        else:
            lane = lax.broadcasted_iota(jnp.int32, (tile_rows, LANES), 1)
            valid = (grow < full_rows) | ((grow == full_rows) & (lane < lane_rem))
        accumulate(jnp.where(valid, contrib, 0.0))

    if fast_blocks > 0:
        @pl.when(b < fast_blocks)
        def _():
            accumulate(contrib)       # unmasked fast path (common case)

        @pl.when(b >= fast_blocks)
        def _():
            masked()
    else:
        masked()


def _chip_kind():
    try:
        return jax.devices()[0].device_kind.lower()
    except Exception:
        return ""


def masked_mse_loss(inputs, target, mask, *, tile_rows=None, num_cores=None):
    """Pallas TPU implementation of MaskedMSELoss.forward."""
    assert inputs.shape == target.shape == mask.shape
    total = int(inputs.size)
    assert total > 0

    x = inputs.reshape(-1)
    t = target.reshape(-1)
    m = mask.reshape(-1)

    full_rows, lane_rem = divmod(total, LANES)
    rows = full_rows + (1 if lane_rem else 0)
    padded = rows * LANES
    if padded != total:
        # Rare path (total % 128 != 0): tiny pad to reshape to (rows, 128);
        # padded elements are masked out inside the kernel.
        pad = padded - total
        x = jnp.pad(x, (0, pad))
        t = jnp.pad(t, (0, pad))
        m = jnp.pad(m, (0, pad))

    x = x.reshape(rows, LANES)
    t = t.reshape(rows, LANES)
    m = m.reshape(rows, LANES)

    kind = _chip_kind()
    is_v7 = "v7" in kind
    is_v5 = "v5" in kind

    # Tile sizing: big blocks to amortise the ~0.35 us/step overhead.
    if tile_rows is None:
        cap = 4096 if is_v5 else 8192
    else:
        cap = max(1, int(tile_rows))
    cap = max(ROW_ALIGN, (cap // ROW_ALIGN) * ROW_ALIGN)

    if rows < ROW_ALIGN or (rows <= cap and rows % ROW_ALIGN != 0):
        tile_rows_eff = rows  # single full-array block (always a legal tile)
    else:
        tile_rows_eff = min(cap, (rows // ROW_ALIGN) * ROW_ALIGN)

    total_blocks = pl.cdiv(rows, tile_rows_eff)

    # Generation-aware core split: 2 only on v7x (2 TCs/chip), else 1.
    if num_cores is None:
        num_cores = 2 if (is_v7 and total_blocks >= 2) else 1
    num_cores = max(1, min(int(num_cores), total_blocks))
    bpc = pl.cdiv(total_blocks, num_cores)   # blocks per "core"

    # Blocks b < fast_blocks are fully valid; only later blocks need masking.
    fast_blocks = full_rows // tile_rows_eff
    mask_possible = (num_cores * bpc) > fast_blocks

    def in_index_map(c, i):
        b = c * bpc + i
        # Clamp overshooting blocks; the kernel masks their contribution to 0.
        return (jnp.minimum(b, total_blocks - 1), 0)

    in_spec = pl.BlockSpec((tile_rows_eff, LANES), in_index_map)
    # Per-core resident accumulator (leading dim squeezed inside the kernel).
    out_spec = pl.BlockSpec((None, ACC_ROWS, LANES), lambda c, i: (c, 0, 0))

    kernel = functools.partial(
        _masked_mse_kernel,
        tile_rows=tile_rows_eff,
        blocks_per_core=bpc,
        fast_blocks=fast_blocks,
        mask_possible=mask_possible,
        full_rows=full_rows,
        lane_rem=lane_rem,
    )

    itemsizes = (jnp.dtype(x.dtype).itemsize + jnp.dtype(t.dtype).itemsize
                 + jnp.dtype(m.dtype).itemsize)
    block_bytes = tile_rows_eff * LANES * itemsizes
    # Double-buffered inputs + accumulators + headroom (v7x has 64 MiB/TC).
    vmem_limit = int(min(max(2 * block_bytes + (4 << 20), 16 << 20), 48 << 20))

    cost = pl.CostEstimate(
        flops=5 * total,
        transcendentals=0,
        bytes_accessed=int(x.nbytes) + int(t.nbytes) + int(m.nbytes)
        + num_cores * ACC_ROWS * LANES * 4,
    )

    partials = pl.pallas_call(
        kernel,
        out_shape=jax.ShapeDtypeStruct((num_cores, ACC_ROWS, LANES), jnp.float32),
        grid_spec=pltpu.PrefetchScalarGridSpec(
            num_scalar_prefetch=0,
            grid=(num_cores, bpc),
            in_specs=[in_spec, in_spec, in_spec],
            out_specs=out_spec,
        ),
        compiler_params=pltpu.CompilerParams(
            # TODO(synk): on v7x verify "parallel" actually core-shards axis 0;
            # if not, switch to pltpu.CORE_PARALLEL / pl.core_map.
            dimension_semantics=("parallel", "arbitrary"),
            vmem_limit_bytes=vmem_limit,
        ),
        cost_estimate=cost,
    )(x, t, m)

    # Tiny final reduce + mean scaling (PyTorch: mean over ALL elements).
    return jnp.sum(partials) * jnp.float32(1.0 / total)


if __name__ == "__main__":
    key = jax.random.PRNGKey(0)
    ks = jax.random.split(key, 12)

    # Test 1: NCHW shape matching the PyTorch module's typical usage (exact
    # tiling -> masking compiled out).
    B, C, H, W = 2, 4, 16, 16
    inputs = jax.random.normal(ks[0], (B, C, H, W), dtype=jnp.float32)
    target = jax.random.normal(ks[1], (B, C, H, W), dtype=jnp.float32)
    mask = (jax.random.uniform(ks[2], (B, C, H, W)) > 0.5).astype(jnp.float32)
    loss = jax.block_until_ready(masked_mse_loss(inputs, target, mask))
    ref = jnp.mean((inputs - target) ** 2 * (1.0 - mask))
    assert jnp.allclose(loss, ref, rtol=1e-5, atol=1e-6), (loss, ref)

    # Test 2: size not a multiple of 128 -> lane-remainder masked path.
    shape2 = (1, 1, 40, 100)  # 4000 elements
    x2 = jax.random.normal(ks[3], shape2, dtype=jnp.float32)
    t2 = jax.random.normal(ks[4], shape2, dtype=jnp.float32)
    m2 = (jax.random.uniform(ks[5], shape2) > 0.3).astype(jnp.float32)
    loss2 = jax.block_until_ready(masked_mse_loss(x2, t2, m2, tile_rows=8))
    ref2 = jnp.mean((x2 - t2) ** 2 * (1.0 - m2))
    assert jnp.allclose(loss2, ref2, rtol=1e-5, atol=1e-6), (loss2, ref2)

    # Test 3: multi-block grid with a partial last block -> exercises the
    # per-block @pl.when gating (fast path + masked tail block).
    shape3 = (2, 4, 33, 64)  # 16896 elements = 132 rows of 128
    x3 = jax.random.normal(ks[6], shape3, dtype=jnp.float32)
    t3 = jax.random.normal(ks[7], shape3, dtype=jnp.float32)
    m3 = (jax.random.uniform(ks[8], shape3) > 0.5).astype(jnp.float32)
    loss3 = jax.block_until_ready(masked_mse_loss(x3, t3, m3, tile_rows=32))
    ref3 = jnp.mean((x3 - t3) ** 2 * (1.0 - m3))
    assert jnp.allclose(loss3, ref3, rtol=1e-5, atol=1e-6), (loss3, ref3)

    # Test 4: narrow dtypes (bf16 inputs/target, int8 mask) -- the HBM-byte
    # lever from the review; kernel upcasts in VMEM.
    x4 = jax.random.normal(ks[9], (B, C, H, W), dtype=jnp.bfloat16)
    t4 = jax.random.normal(ks[10], (B, C, H, W), dtype=jnp.bfloat16)
    m4 = (jax.random.uniform(ks[11], (B, C, H, W)) > 0.5).astype(jnp.int8)
    loss4 = jax.block_until_ready(masked_mse_loss(x4, t4, m4))
    ref4 = jnp.mean((x4.astype(jnp.float32) - t4.astype(jnp.float32)) ** 2
                    * (1.0 - m4.astype(jnp.float32)))
    assert jnp.allclose(loss4, ref4, rtol=1e-5, atol=1e-6), (loss4, ref4)

    print("KERNEL_OK")
</pallas_src>

<mosaic_0001>
module attributes {stable_mosaic.version = 11 : i64} {
  func.func @_masked_mse_kernel(%arg0: i32, %arg1: i32, %arg2: memref<16x128xf32, #tpu.memory_space<vmem>>, %arg3: memref<16x128xf32, #tpu.memory_space<vmem>>, %arg4: memref<16x128xf32, #tpu.memory_space<vmem>>, %arg5: memref<1x32x128xf32, #tpu.memory_space<vmem>>) attributes {dimension_semantics = [#tpu.dimension_semantics<parallel>, #tpu.dimension_semantics<arbitrary>], iteration_bounds = array<i64: 1, 1>, scalar_prefetch = 0 : i64, scratch_operands = 0 : i64, tpu.core_type = #tpu.core_type<tc>, window_params = [{transform_indices = @transform_0, window_bounds = array<i64: 16, 128>}, {transform_indices = @transform_1, window_bounds = array<i64: 16, 128>}, {transform_indices = @transform_2, window_bounds = array<i64: 16, 128>}, {transform_indices = @transform_3, window_bounds = array<i64: 1, 32, 128>}]} {
    %c0_i32 = arith.constant 0 : i32
    %0 = arith.cmpi eq, %arg1, %c0_i32 : i32
    %1 = arith.extui %0 : i1 to i32
    %c0_i32_0 = arith.constant 0 : i32
    %2 = arith.cmpi ne, %1, %c0_i32_0 : i32
    scf.if %2 {
      %cst_12 = arith.constant 0.000000e+00 : f32
      %17 = vector.broadcast %cst_12 : f32 to vector<32x128xf32>
      %c0_13 = arith.constant 0 : index
      %c0_14 = arith.constant 0 : index
      %c0_15 = arith.constant 0 : index
      %18 = vector.load %arg5[%c0_13, %c0_14, %c0_15] : memref<1x32x128xf32, #tpu.memory_space<vmem>>, vector<1x32x128xf32>
      %19 = vector.shape_cast %18 : vector<1x32x128xf32> to vector<32x128xf32>
      %20 = vector.shape_cast %17 : vector<32x128xf32> to vector<1x32x128xf32>
      tpu.vector_store %arg5[%c0_13, %c0_14, %c0_15], %20 {strides = array<i32>} : memref<1x32x128xf32, #tpu.memory_space<vmem>>, vector<1x32x128xf32>,
    } else {
    }
    %c0 = arith.constant 0 : index
    %c0_1 = arith.constant 0 : index
    %3 = vector.load %arg2[%c0, %c0_1] : memref<16x128xf32, #tpu.memory_space<vmem>>, vector<16x128xf32>
    %c0_2 = arith.constant 0 : index
    %c0_3 = arith.constant 0 : index
    %4 = vector.load %arg3[%c0_2, %c0_3] : memref<16x128xf32, #tpu.memory_space<vmem>>, vector<16x128xf32>
    %c0_4 = arith.constant 0 : index
    %c0_5 = arith.constant 0 : index
    %5 = vector.load %arg4[%c0_4, %c0_5] : memref<16x128xf32, #tpu.memory_space<vmem>>, vector<16x128xf32>
    %cst = arith.constant 1.000000e+00 : f32
    %6 = vector.broadcast %cst : f32 to vector<16x128xf32>
    %7 = arith.subf %6, %5 : vector<16x128xf32>
    %8 = arith.subf %3, %4 : vector<16x128xf32>
    %9 = arith.mulf %8, %8 : vector<16x128xf32>
    %10 = arith.mulf %9, %7 : vector<16x128xf32>
    %c0_6 = arith.constant 0 : index
    %c0_7 = arith.constant 0 : index
    %c0_8 = arith.constant 0 : index
    %11 = vector.load %arg5[%c0_6, %c0_7, %c0_8] : memref<1x32x128xf32, #tpu.memory_space<vmem>>, vector<1x16x128xf32>
    %12 = vector.shape_cast %11 : vector<1x16x128xf32> to vector<16x128xf32>
    %13 = arith.addf %12, %10 : vector<16x128xf32>
    %c0_9 = arith.constant 0 : index
    %c0_10 = arith.constant 0 : index
    %c0_11 = arith.constant 0 : index
    %14 = vector.load %arg5[%c0_9, %c0_10, %c0_11] : memref<1x32x128xf32, #tpu.memory_space<vmem>>, vector<1x16x128xf32>
    %15 = vector.shape_cast %14 : vector<1x16x128xf32> to vector<16x128xf32>
    %16 = vector.shape_cast %13 : vector<16x128xf32> to vector<1x16x128xf32>
    tpu.vector_store %arg5[%c0_9, %c0_10, %c0_11], %16 {strides = array<i32>} : memref<1x32x128xf32, #tpu.memory_space<vmem>>, vector<1x16x128xf32>,
    return
  }
  func.func @transform_0(%arg0: i32, %arg1: i32) -> (i32, i32) {
    %c1_i32 = arith.constant 1 : i32
    %0 = arith.muli %arg0, %c1_i32 : i32
    %1 = arith.addi %0, %arg1 : i32
    %c0_i32 = arith.constant 0 : i32
    %2 = arith.minsi %1, %c0_i32 : i32
    %c0_i32_0 = arith.constant 0 : i32
    %c0_i32_1 = arith.constant 0 : i32
    return %2, %c0_i32_0 : i32, i32
  }
  func.func @transform_1(%arg0: i32, %arg1: i32) -> (i32, i32) {
    %c1_i32 = arith.constant 1 : i32
    %0 = arith.muli %arg0, %c1_i32 : i32
    %1 = arith.addi %0, %arg1 : i32
    %c0_i32 = arith.constant 0 : i32
    %2 = arith.minsi %1, %c0_i32 : i32
    %c0_i32_0 = arith.constant 0 : i32
    %c0_i32_1 = arith.constant 0 : i32
    return %2, %c0_i32_0 : i32, i32
  }
  func.func @transform_2(%arg0: i32, %arg1: i32) -> (i32, i32) {
    %c1_i32 = arith.constant 1 : i32
    %0 = arith.muli %arg0, %c1_i32 : i32
    %1 = arith.addi %0, %arg1 : i32
    %c0_i32 = arith.constant 0 : i32
    %2 = arith.minsi %1, %c0_i32 : i32
    %c0_i32_0 = arith.constant 0 : i32
    %c0_i32_1 = arith.constant 0 : i32
    return %2, %c0_i32_0 : i32, i32
  }
  func.func @transform_3(%arg0: i32, %arg1: i32) -> (i32, i32, i32) {
    %c0_i32 = arith.constant 0 : i32
    %c0_i32_0 = arith.constant 0 : i32
    %c0_i32_1 = arith.constant 0 : i32
    return %arg0, %c0_i32, %c0_i32_0 : i32, i32, i32
  }
}

</mosaic_0001>

<llo_original>
// kernel: tpu_custom_call.1
$region0: #{tpu_custom_call.1}
  #allocation0 [shape = 'u32[]', space=smem, size = 0x4, offset = 0x4, fixed_abs, tag = 'smem constant byte address 0x4 - core index']
  #allocation1 [shape = 'u32[144,128]{1,0:T(1,128)}', space=vmem, size = 0x12000, scoped, tag = 'internal scratch']
  %s0 = inlined_call_operand.hbm [shape: f32[16,128], index: 0, kind: input, shape index: {}]
  %s1 = inlined_call_operand.hbm [shape: f32[16,128], index: 1, kind: input, shape index: {}]
  %s2 = inlined_call_operand.hbm [shape: f32[16,128], index: 2, kind: input, shape index: {}]
  %s3 = inlined_call_operand.hbm [shape: f32[1,32,128], index: 3, kind: output, shape index: {}]
  %s4 = sld [smem:[#allocation0]]
  $region38: #{tpu_custom_call.1} parent=0
    _
  %s6 = ssub.s32 1, %s4
  %s7 = scalar_select 0, %s6, %s4
  $region1: #{tpu_custom_call.1} parent=0
    #allocation2 [shape = 'u8[8192]{0}', space=vmem, size = 0x2000, scoped, tag = 'input window, operand 0, single buffered']
    #allocation3 [shape = 's32[1]{0}', space=sflag, size = 0x4, scoped, tag = 'scoped memory for tpu_custom_call.1']
    #allocation4 [shape = 's32[1]{0}', space=sflag, size = 0x4, scoped, tag = 'scoped memory for tpu_custom_call.1']
    #allocation5 [shape = 'u8[8192]{0}', space=vmem, size = 0x2000, scoped, tag = 'input window, operand 1, single buffered']
    #allocation6 [shape = 's32[1]{0}', space=sflag, size = 0x4, scoped, tag = 'scoped memory for tpu_custom_call.1']
    #allocation7 [shape = 'u8[8192]{0}', space=vmem, size = 0x2000, scoped, tag = 'input window, operand 2, single buffered']
    #allocation8 [shape = 'u8[16384]{0}', space=vmem, size = 0x4000, scoped, tag = 'output window, operand 0, single buffered']
    %8 = vsyncpa [#allocation3], 0
    %9 = vsyncpa [#allocation6], 0
    %10 = vsyncpa [#allocation4], 0
    // Predicated region
    $region2: #{tpu_custom_call.1} parent=1 // pred_check
      _
    $region3: #{tpu_custom_call.1} parent=1 // pred_check_branch
      %12 = sbr.rel (0) target = $region5
    $region4: #{tpu_custom_call.1} parent=1 // pred_region
      %s13 = sadd.s32 0, 0
      %p14 = scmp.lt.s32.totalorder %s13, 0
      %s15 = scalar_select %p14, %s13, 0
      %s16 = smul.u32 2, %s15
      %s18 = ssub.s32 256, 256
      %19 = vsyncadd [#allocation3], %s18
      %s20 = smul.addr %s16, 128
      %s21 = scalar_lea.hbm %s0, %s20
      %s22 = sshll.u32 [#allocation2], 4
      %s23 = int_to_ptr.vmem [resolvable:$true] %s22
      %28 = dma.hbm_to_vmem [thread:$0]  %s21, 256, %s23, [#allocation3], 128, 128, 8
    $region5: #{tpu_custom_call.1} parent=1 // pred_fallthru
      _
    // Predicated region
    $region6: #{tpu_custom_call.1} parent=1 // pred_check
      _
    $region7: #{tpu_custom_call.1} parent=1 // pred_check_branch
      %30 = sbr.rel (0) target = $region9
    $region8: #{tpu_custom_call.1} parent=1 // pred_region
      %s31 = sadd.s32 0, 0
      %p32 = scmp.lt.s32.totalorder %s31, 0
      %s33 = scalar_select %p32, %s31, 0
      %s34 = smul.u32 2, %s33
      %s36 = ssub.s32 256, 256
      %37 = vsyncadd [#allocation6], %s36
      %s38 = smul.addr %s34, 128
      %s39 = scalar_lea.hbm %s1, %s38
      %s40 = sshll.u32 [#allocation5], 4
      %s41 = int_to_ptr.vmem [resolvable:$true] %s40
      %46 = dma.hbm_to_vmem [thread:$0]  %s39, 256, %s41, [#allocation6], 128, 128, 8
    $region9: #{tpu_custom_call.1} parent=1 // pred_fallthru
      _
    // Predicated region
    $region10: #{tpu_custom_call.1} parent=1 // pred_check
      _
    $region11: #{tpu_custom_call.1} parent=1 // pred_check_branch
      %48 = sbr.rel (0) target = $region13
    $region12: #{tpu_custom_call.1} parent=1 // pred_region
      %s49 = sadd.s32 0, 0
      %p50 = scmp.lt.s32.totalorder %s49, 0
      %s51 = scalar_select %p50, %s49, 0
      %s52 = smul.u32 2, %s51
      %s54 = ssub.s32 256, 256
      %55 = vsyncadd [#allocation6], %s54
      %s56 = smul.addr %s52, 128
      %s57 = scalar_lea.hbm %s2, %s56
      %s58 = sshll.u32 [#allocation7], 4
      %s59 = int_to_ptr.vmem [resolvable:$true] %s58
      %64 = dma.hbm_to_vmem [thread:$0]  %s57, 256, %s59, [#allocation6], 128, 128, 8
    $region13: #{tpu_custom_call.1} parent=1 // pred_fallthru
      _
    // Predicated region
    $region14: #{tpu_custom_call.1} parent=1 // pred_check
      _
    $region15: #{tpu_custom_call.1} parent=1 // pred_check_branch
      %66 = sbr.rel (0) target = $region17
    $region16: #{tpu_custom_call.1} parent=1 // pred_region
      %67 = dma.done [#allocation3], 256
    $region17: #{tpu_custom_call.1} parent=1 // pred_fallthru
      _
    // Predicated region
    $region18: #{tpu_custom_call.1} parent=1 // pred_check
      _
    $region19: #{tpu_custom_call.1} parent=1 // pred_check_branch
      %69 = sbr.rel (0) target = $region21
    $region20: #{tpu_custom_call.1} parent=1 // pred_region
      %70 = dma.done [#allocation6], 256
    $region21: #{tpu_custom_call.1} parent=1 // pred_fallthru
      _
    // Predicated region
    $region22: #{tpu_custom_call.1} parent=1 // pred_check
      _
    $region23: #{tpu_custom_call.1} parent=1 // pred_check_branch
      %72 = sbr.rel (0) target = $region25
    $region24: #{tpu_custom_call.1} parent=1 // pred_region
      %73 = dma.done [#allocation6], 256
    $region25: #{tpu_custom_call.1} parent=1 // pred_fallthru
      _
    %s74 = sadd.s32 0, 0
    %p75 = scmp.lt.s32.totalorder %s74, 0
    %s76 = scalar_select %p75, %s74, 0
    %s77 = smul.u32 2, %s76
    %s78 = sadd.s32 0, 0
    %p79 = scmp.lt.s32.totalorder %s78, 0
    %s80 = scalar_select %p79, %s78, 0
    %s81 = smul.u32 2, %s80
    %s82 = sadd.s32 0, 0
    %p83 = scmp.lt.s32.totalorder %s82, 0
    %s84 = scalar_select %p83, %s82, 0
    %s85 = smul.u32 2, %s84
    %p86 = scmp.eq.s32.totalorder 0, 0
    // Predicated region
    $region26: #{tpu_custom_call.1} parent=1 // pred_check
      %p87 = pneg %p86
    $region27: #{tpu_custom_call.1} parent=1 // pred_check_branch
      %89 = sbr.rel (%p87) target = $region29
    $region28: #{tpu_custom_call.1} parent=1 // pred_region
      %90 = vst [vmem:[#allocation8] sm:$0xff] 0.0
      %91 = vst [vmem:[#allocation8 + $0x8] sm:$0xff] 0.0
      %92 = vst [vmem:[#allocation8 + $0x10] sm:$0xff] 0.0
      %93 = vst [vmem:[#allocation8 + $0x18] sm:$0xff] 0.0
    $region29: #{tpu_custom_call.1} parent=1 // pred_fallthru
      _
    %v94 = vld [vmem:[#allocation2] sm:$0xff]
    %v95 = vld [vmem:[#allocation2 + $0x8] sm:$0xff]
    %v96 = vld [vmem:[#allocation5] sm:$0xff]
    %v97 = vld [vmem:[#allocation5 + $0x8] sm:$0xff]
    %v98 = vld [vmem:[#allocation7] sm:$0xff]
    %v99 = vld [vmem:[#allocation7 + $0x8] sm:$0xff]
    %v100 = vsub.f32 1.0, %v98
    %v101 = vsub.f32 1.0, %v99
    %v102 = vsub.f32 %v94, %v96
    %v103 = vsub.f32 %v95, %v97
    %v104 = vmul.f32 %v102, %v102
    %v105 = vmul.f32 %v103, %v103
    %v106 = vmul.f32 %v104, %v100
    %v107 = vmul.f32 %v105, %v101
    %v108 = vld [vmem:[#allocation8] sm:$0xff]
    %v109 = vld [vmem:[#allocation8 + $0x8] sm:$0xff]
    %v110 = vadd.f32 %v108, %v106
    %v111 = vadd.f32 %v109, %v107
    %112 = vst [vmem:[#allocation8] sm:$0xff] %v110
    %113 = vst [vmem:[#allocation8 + $0x8] sm:$0xff] %v111
    // Predicated region
    $region30: #{tpu_custom_call.1} parent=1 // pred_check
      _
    $region31: #{tpu_custom_call.1} parent=1 // pred_check_branch
      %115 = sbr.rel (0) target = $region33
    $region32: #{tpu_custom_call.1} parent=1 // pred_region
      %s117 = ssub.s32 512, 512
      %118 = vsyncadd [#allocation4], %s117
      %s119 = sshll.u32 [#allocation8], 4
      %s120 = int_to_ptr.vmem [resolvable:$true] %s119
      %125 = dma.vmem_to_hbm [thread:$0]  %s120, 512, %s3, [#allocation4], 128, 128, 8
    $region33: #{tpu_custom_call.1} parent=1 // pred_fallthru
      _
    // Predicated region
    $region34: #{tpu_custom_call.1} parent=1 // pred_check
      _
    $region35: #{tpu_custom_call.1} parent=1 // pred_check_branch
      %127 = sbr.rel (0) target = $region37
    $region36: #{tpu_custom_call.1} parent=1 // pred_region
      %128 = dma.done [#allocation4], 512
    $region37: #{tpu_custom_call.1} parent=1 // pred_fallthru
      _
    %129 = vsyncpa [#allocation3], 1
    %130 = vsyncpa [#allocation6], 1
    %131 = vsyncpa [#allocation4], 1

</llo_original>
